<compile_context>
chip_gen: v7x
topology: tpu7x:2x2x1
jax: 0.10.0
libtpu: 0.0.40
codegen_flags: <defaults>
</compile_context>

<pallas_src>
import functools

import jax
import jax.numpy as jnp
from jax.experimental import pallas as pl
from jax.experimental.pallas import tpu as pltpu
from jax.scipy.special import logsumexp

_VMEM_LIMIT_BYTES = 32 * 1024 * 1024   # <= physical on v5e/v6e/v7x; lets tm reach 4096


def _round_up(x, m):
    return ((x + m - 1) // m) * m


def _pick_tile_rows(bt, tile_rows):
    """Row-tile size: as large as possible (amortize ~0.35us/grid-step overhead),
    multiple of 8, but keep >=4 grid steps for large problems (v7x megacore)."""
    tm = min(tile_rows, _round_up(bt, 8))
    while tm > 512 and _round_up(bt, tm) // tm < 4:
        tm //= 2
    return max(tm, 8)


# ---------------------------------------------------------------------------
# Kernels
# ---------------------------------------------------------------------------

def _one_hot_logits(idx_ref, table_ref):
    """Embedding row gather as one_hot(idx) @ table on the MXU.

    precision=HIGHEST keeps the f32 table operand exact (every output element is
    exactly one table entry), so logits match the reference to f32 rounding.
    """
    tm = idx_ref.shape[0]
    kp = table_ref.shape[0]                                     # round_up(V, 8)
    idx = idx_ref[...]                                          # (tm, 1) int32
    col = jax.lax.broadcasted_iota(jnp.int32, (tm, kp), 1)
    one_hot = (col == idx).astype(jnp.float32)                  # (tm, kp)
    return jnp.dot(one_hot, table_ref[...],
                   preferred_element_type=jnp.float32,
                   precision=jax.lax.Precision.HIGHEST)         # (tm, 128)


def _row_loss(logits_full, tgt_ref, vocab_size):
    """Per-row cross entropy.  Column `vocab_size` of logits_full already holds
    the precomputed log-sum-exp of the selected table row, so there is no
    exp/log work in-kernel: rowloss = lse - logits[target]."""
    tm, lanes = logits_full.shape
    col = jax.lax.broadcasted_iota(jnp.int32, (tm, lanes), 1)
    tgt = tgt_ref[...]                                          # (tm, 1) int32
    contrib = (jnp.where(col == vocab_size, logits_full, 0.0)
               - jnp.where(col == tgt, logits_full, 0.0))
    return jnp.sum(contrib, axis=-1, keepdims=True)             # (tm, 1)


def _train_kernel(idx_ref, tgt_ref, table_ref, logits_ref, rowloss_ref, *, vocab_size):
    logits_full = _one_hot_logits(idx_ref, table_ref)
    # Unpadded vocab lane dim on the HBM output: no 128/65 write blow-up and no
    # second full-tensor slice copy in the wrapper.
    logits_ref[...] = logits_full[:, :vocab_size]
    rowloss_ref[...] = _row_loss(logits_full, tgt_ref, vocab_size)


def _loss_kernel(idx_ref, tgt_ref, table_ref, rowloss_ref, *, vocab_size):
    logits_full = _one_hot_logits(idx_ref, table_ref)
    rowloss_ref[...] = _row_loss(logits_full, tgt_ref, vocab_size)


def _infer_kernel(idx_ref, table_ref, logits_ref, *, vocab_size):
    logits_full = _one_hot_logits(idx_ref, table_ref)
    logits_ref[...] = logits_full[:, :vocab_size]


# ---------------------------------------------------------------------------
# Wrappers
# ---------------------------------------------------------------------------

def _padded_table(table):
    """(V, V) -> (round_up(V,8), round_up(V+1,128)) f32.
    Column V carries the per-row log-sum-exp (read back for free by the matmul)."""
    V = table.shape[0]
    vs = _round_up(V, 8)
    vl = _round_up(V + 1, 128)
    tf = table.astype(jnp.float32)
    tp = jnp.zeros((vs, vl), jnp.float32)
    tp = tp.at[:V, :V].set(tf)
    tp = tp.at[:V, V].set(logsumexp(tf, axis=-1))
    return tp


def _padded_tokens(tok, bt_pad):
    bt = tok.size
    flat = tok.reshape(bt, 1).astype(jnp.int32)
    return jnp.pad(flat, ((0, bt_pad - bt), (0, 0)))


def _compiler_params():
    return pltpu.CompilerParams(dimension_semantics=("parallel",),
                                vmem_limit_bytes=_VMEM_LIMIT_BYTES)


@functools.partial(jax.jit, static_argnames=("tm",))
def _train_call(idx, targets, table, *, tm):
    B, T = idx.shape
    V = table.shape[0]
    BT = B * T
    bt_pad = _round_up(BT, tm)
    table_pad = _padded_table(table)
    vs, vl = table_pad.shape

    kernel = functools.partial(_train_kernel, vocab_size=V)
    logits, row_loss = pl.pallas_call(
        kernel,
        out_shape=(jax.ShapeDtypeStruct((bt_pad, V), jnp.float32),
                   jax.ShapeDtypeStruct((bt_pad, 1), jnp.float32)),
        grid=(bt_pad // tm,),
        in_specs=[
            pl.BlockSpec((tm, 1), lambda i: (i, 0)),      # token ids (sublane-major)
            pl.BlockSpec((tm, 1), lambda i: (i, 0)),      # targets
            pl.BlockSpec((vs, vl), lambda i: (0, 0)),     # table + LSE col, resident
        ],
        out_specs=(
            pl.BlockSpec((tm, V), lambda i: (i, 0)),      # logits, unpadded lanes
            pl.BlockSpec((tm, 1), lambda i: (i, 0)),      # per-row loss contribution
        ),
        compiler_params=_compiler_params(),
    )(_padded_tokens(idx, bt_pad), _padded_tokens(targets, bt_pad), table_pad)

    logits = logits[:BT]                                  # no-op copy when bt_pad == BT
    loss = jnp.sum(row_loss[:BT, 0]) / BT                 # F.cross_entropy mean
    return logits, loss


@functools.partial(jax.jit, static_argnames=("tm",))
def _loss_call(idx, targets, table, *, tm):
    B, T = idx.shape
    V = table.shape[0]
    BT = B * T
    bt_pad = _round_up(BT, tm)
    table_pad = _padded_table(table)
    vs, vl = table_pad.shape

    kernel = functools.partial(_loss_kernel, vocab_size=V)
    row_loss = pl.pallas_call(
        kernel,
        out_shape=jax.ShapeDtypeStruct((bt_pad, 1), jnp.float32),
        grid=(bt_pad // tm,),
        in_specs=[
            pl.BlockSpec((tm, 1), lambda i: (i, 0)),
            pl.BlockSpec((tm, 1), lambda i: (i, 0)),
            pl.BlockSpec((vs, vl), lambda i: (0, 0)),
        ],
        out_specs=pl.BlockSpec((tm, 1), lambda i: (i, 0)),
        compiler_params=_compiler_params(),
    )(_padded_tokens(idx, bt_pad), _padded_tokens(targets, bt_pad), table_pad)

    return jnp.sum(row_loss[:BT, 0]) / BT


@functools.partial(jax.jit, static_argnames=("tm",))
def _infer_call(idx, table, *, tm):
    B, T = idx.shape
    V = table.shape[0]
    BT = B * T
    bt_pad = _round_up(BT, tm)
    table_pad = _padded_table(table)
    vs, vl = table_pad.shape

    kernel = functools.partial(_infer_kernel, vocab_size=V)
    logits = pl.pallas_call(
        kernel,
        out_shape=jax.ShapeDtypeStruct((bt_pad, V), jnp.float32),
        grid=(bt_pad // tm,),
        in_specs=[
            pl.BlockSpec((tm, 1), lambda i: (i, 0)),
            pl.BlockSpec((vs, vl), lambda i: (0, 0)),
        ],
        out_specs=pl.BlockSpec((tm, V), lambda i: (i, 0)),
        compiler_params=_compiler_params(),
    )(_padded_tokens(idx, bt_pad), table_pad)

    return logits[:BT].reshape(B, T, V)


def bigram_forward(idx, table, targets=None, *, tile_rows=2048):
    """Mirrors BigramLanguageModel.forward.

    targets is None -> (logits [B, T, V], None)
    else            -> (logits [B*T, V], scalar mean loss)   # PyTorch's view(B*T, C)

    tile_rows=2048 is sized for the v5e 16-32 MiB scoped VMEM; 4096 is a good
    choice on v6e/v7x (the explicit 32 MiB vmem_limit_bytes covers it).
    """
    B, T = idx.shape
    tm = _pick_tile_rows(B * T, tile_rows)
    if targets is None:
        return _infer_call(idx, table, tm=tm), None
    return _train_call(idx, targets, table, tm=tm)


def bigram_loss(idx, table, targets, *, tile_rows=2048):
    """Loss-only fast path for training loops: skips the logits HBM writeback."""
    tm = _pick_tile_rows(idx.size, tile_rows)
    return _loss_call(idx, targets, table, tm=tm)


if __name__ == "__main__":
    # Deterministic synthetic setup (no checkpoint load).
    vocab_size = 65   # e.g. Shakespeare char vocab size
    B, T = 2, 8

    key = jax.random.PRNGKey(0)
    k_tab, k_idx, k_tgt = jax.random.split(key, 3)

    # nn.Embedding default init: N(0, 1)
    table = jax.random.normal(k_tab, (vocab_size, vocab_size), jnp.float32)
    idx = jax.random.randint(k_idx, (B, T), 0, vocab_size, jnp.int32)
    targets = jax.random.randint(k_tgt, (B, T), 0, vocab_size, jnp.int32)

    # --- training-mode forward (logits + loss) ---
    logits, loss = bigram_forward(idx, table, targets)
    jax.block_until_ready((logits, loss))

    ref_logits_btv = table[idx]                                  # (B, T, V)
    ref_flat = ref_logits_btv.reshape(B * T, vocab_size)
    ref_lse = logsumexp(ref_flat, axis=-1)
    ref_picked = jnp.take_along_axis(ref_flat, targets.reshape(-1, 1), axis=-1)[:, 0]
    ref_loss = jnp.mean(ref_lse - ref_picked)

    assert logits.shape == (B * T, vocab_size)   # PyTorch returns the view(B*T, C)
    assert jnp.allclose(logits, ref_flat, atol=1e-5), "logits mismatch"
    assert jnp.allclose(loss, ref_loss, atol=1e-5, rtol=1e-5), "loss mismatch"

    # --- inference-mode forward (no targets: no loss work, no target DMA) ---
    logits_inf, none_loss = bigram_forward(idx, table, None)
    jax.block_until_ready(logits_inf)
    assert none_loss is None
    assert logits_inf.shape == (B, T, vocab_size)
    assert jnp.allclose(logits_inf, ref_logits_btv, atol=1e-5), "inference logits mismatch"

    # --- loss-only fast path (no logits writeback at all) ---
    loss_only = bigram_loss(idx, table, targets)
    jax.block_until_ready(loss_only)
    assert jnp.allclose(loss_only, ref_loss, atol=1e-5, rtol=1e-5), "loss-only mismatch"

    # --- larger case exercising multiple grid tiles + row padding ---
    B2, T2 = 16, 300   # BT = 4800 -> tm = 1024, bt_pad = 5120, 5-tile parallel grid
    k_i2, k_t2 = jax.random.split(jax.random.PRNGKey(1))
    idx2 = jax.random.randint(k_i2, (B2, T2), 0, vocab_size, jnp.int32)
    tgt2 = jax.random.randint(k_t2, (B2, T2), 0, vocab_size, jnp.int32)
    logits2, loss2 = bigram_forward(idx2, table, tgt2)
    jax.block_until_ready((logits2, loss2))

    ref2 = table[idx2].reshape(B2 * T2, vocab_size)
    lse2 = logsumexp(ref2, axis=-1)
    picked2 = jnp.take_along_axis(ref2, tgt2.reshape(-1, 1), axis=-1)[:, 0]
    ref_loss2 = jnp.mean(lse2 - picked2)
    assert jnp.allclose(logits2, ref2, atol=1e-5), "gridded logits mismatch"
    assert jnp.allclose(loss2, ref_loss2, atol=1e-5, rtol=1e-5), "gridded loss mismatch"

    # Loss-only path with a small tile to exercise a 10-step grid.
    loss2_only = bigram_loss(idx2, table, tgt2, tile_rows=512)
    jax.block_until_ready(loss2_only)
    assert jnp.allclose(loss2_only, ref_loss2, atol=1e-5, rtol=1e-5), "loss-only gridded mismatch"

    print("KERNEL_OK")
</pallas_src>

<mosaic_0001>
module attributes {stable_mosaic.version = 11 : i64} {
  func.func @_train_kernel(%arg0: i32, %arg1: memref<16x1xi32, #tpu.memory_space<vmem>>, %arg2: memref<16x1xi32, #tpu.memory_space<vmem>>, %arg3: memref<72x128xf32, #tpu.memory_space<vmem>>, %arg4: memref<16x65xf32, #tpu.memory_space<vmem>>, %arg5: memref<16x1xf32, #tpu.memory_space<vmem>>) attributes {dimension_semantics = [#tpu.dimension_semantics<parallel>], iteration_bounds = array<i64: 1>, scalar_prefetch = 0 : i64, scratch_operands = 0 : i64, tpu.core_type = #tpu.core_type<tc>, window_params = [{transform_indices = @transform_0, window_bounds = array<i64: 16, 1>}, {transform_indices = @transform_1, window_bounds = array<i64: 16, 1>}, {pipeline_mode = #tpu.pipeline_mode<synchronous>, transform_indices = @transform_2, window_bounds = array<i64: 72, 128>}, {transform_indices = @transform_3, window_bounds = array<i64: 16, 65>}, {transform_indices = @transform_4, window_bounds = array<i64: 16, 1>}]} {
    %c0 = arith.constant 0 : index
    %c0_0 = arith.constant 0 : index
    %0 = vector.load %arg1[%c0, %c0_0] : memref<16x1xi32, #tpu.memory_space<vmem>>, vector<16x1xi32>
    %1 = tpu.iota {dimensions = array<i32: 1>} : vector<16x72xi32>
    %2 = vector.broadcast %0 : vector<16x1xi32> to vector<16x72xi32>
    %3 = arith.cmpi eq, %1, %2 : vector<16x72xi32>
    %4 = arith.extui %3 : vector<16x72xi1> to vector<16x72xi32>
    %5 = arith.sitofp %4 : vector<16x72xi32> to vector<16x72xf32>
    %c0_1 = arith.constant 0 : index
    %c0_2 = arith.constant 0 : index
    %6 = vector.load %arg3[%c0_1, %c0_2] : memref<72x128xf32, #tpu.memory_space<vmem>>, vector<72x128xf32>
    %cst = arith.constant dense<0.000000e+00> : vector<16x128xf32>
    %7 = tpu.matmul %5, %6, %cst {dimension_numbers = #tpu.dot_dimension_numbers<[1], [0], [0], [1], [0, 0, 1, 1], [], []>, precision = #tpu.contract_precision<fp32>} : vector<16x72xf32>, vector<72x128xf32>, vector<16x128xf32> -> vector<16x128xf32>
    %8 = vector.extract_strided_slice %7 {offsets = [0, 0], sizes = [16, 65], strides = [1, 1]} : vector<16x128xf32> to vector<16x65xf32>
    %c0_3 = arith.constant 0 : index
    %c0_4 = arith.constant 0 : index
    %9 = vector.load %arg4[%c0_3, %c0_4] : memref<16x65xf32, #tpu.memory_space<vmem>>, vector<16x65xf32>
    tpu.vector_store %arg4[%c0_3, %c0_4], %8 {strides = array<i32>} : memref<16x65xf32, #tpu.memory_space<vmem>>, vector<16x65xf32>,
    %10 = tpu.iota {dimensions = array<i32: 1>} : vector<16x128xi32>
    %c0_5 = arith.constant 0 : index
    %c0_6 = arith.constant 0 : index
    %11 = vector.load %arg2[%c0_5, %c0_6] : memref<16x1xi32, #tpu.memory_space<vmem>>, vector<16x1xi32>
    %c65_i32 = arith.constant 65 : i32
    %12 = vector.broadcast %c65_i32 : i32 to vector<16x128xi32>
    %13 = arith.cmpi eq, %10, %12 : vector<16x128xi32>
    %cst_7 = arith.constant 0.000000e+00 : f32
    %14 = vector.broadcast %cst_7 : f32 to vector<16x128xf32>
    %15 = arith.select %13, %7, %14 : vector<16x128xi1>, vector<16x128xf32>
    %16 = vector.broadcast %11 : vector<16x1xi32> to vector<16x128xi32>
    %17 = arith.cmpi eq, %10, %16 : vector<16x128xi32>
    %cst_8 = arith.constant 0.000000e+00 : f32
    %18 = vector.broadcast %cst_8 : f32 to vector<16x128xf32>
    %19 = arith.select %17, %7, %18 : vector<16x128xi1>, vector<16x128xf32>
    %20 = arith.subf %15, %19 : vector<16x128xf32>
    %cst_9 = arith.constant dense<0.000000e+00> : vector<16xf32>
    %21 = vector.multi_reduction <add>, %20, %cst_9 [1] : vector<16x128xf32> to vector<16xf32>
    %22 = vector.shape_cast %21 : vector<16xf32> to vector<16x1xf32>
    %c0_10 = arith.constant 0 : index
    %c0_11 = arith.constant 0 : index
    %23 = vector.load %arg5[%c0_10, %c0_11] : memref<16x1xf32, #tpu.memory_space<vmem>>, vector<16x1xf32>
    tpu.vector_store %arg5[%c0_10, %c0_11], %22 {strides = array<i32>} : memref<16x1xf32, #tpu.memory_space<vmem>>, vector<16x1xf32>,
    return
  }
  func.func @transform_0(%arg0: i32) -> (i32, i32) {
    %c0_i32 = arith.constant 0 : i32
    %c0_i32_0 = arith.constant 0 : i32
    return %arg0, %c0_i32 : i32, i32
  }
  func.func @transform_1(%arg0: i32) -> (i32, i32) {
    %c0_i32 = arith.constant 0 : i32
    %c0_i32_0 = arith.constant 0 : i32
    return %arg0, %c0_i32 : i32, i32
  }
  func.func @transform_2(%arg0: i32) -> (i32, i32) {
    %c0_i32 = arith.constant 0 : i32
    %c0_i32_0 = arith.constant 0 : i32
    %c0_i32_1 = arith.constant 0 : i32
    return %c0_i32, %c0_i32_0 : i32, i32
  }
  func.func @transform_3(%arg0: i32) -> (i32, i32) {
    %c0_i32 = arith.constant 0 : i32
    %c0_i32_0 = arith.constant 0 : i32
    return %arg0, %c0_i32 : i32, i32
  }
  func.func @transform_4(%arg0: i32) -> (i32, i32) {
    %c0_i32 = arith.constant 0 : i32
    %c0_i32_0 = arith.constant 0 : i32
    return %arg0, %c0_i32 : i32, i32
  }
}

</mosaic_0001>

<llo_original>
// kernel: _train_call.1
$region0: #{_train_call.1}
  #allocation0 [shape = 'u32[]', space=smem, size = 0x4, offset = 0x4, fixed_abs, tag = 'smem constant byte address 0x4 - core index']
  #allocation1 [shape = 'u32[144,128]{1,0:T(1,128)}', space=vmem, size = 0x12000, scoped, tag = 'internal scratch']
  %s0 = inlined_call_operand.vmem [shape: s32[16,1], index: 0, kind: input, shape index: {}]
  %s1 = inlined_call_operand.vmem [shape: s32[16,1], index: 1, kind: input, shape index: {}]
  %s2 = inlined_call_operand.vmem [shape: f32[72,128], index: 2, kind: input, shape index: {}]
  %s3 = inlined_call_operand.hbm [shape: f32[16,65], index: 3, kind: output, shape index: {0}]
  %s4 = inlined_call_operand.vmem [shape: f32[16,1], index: 4, kind: output, shape index: {1}]
  %5 = xla_tuple %s3, %s4
  %s6 = sld [smem:[#allocation0]]
  $region30: #{_train_call.1} parent=0
    _
  %s8 = ssub.s32 1, %s6
  %s9 = scalar_select 0, %s8, %s6
  $region1: #{_train_call.1} parent=0
    #allocation2 [shape = 'u8[8192]{0}', space=vmem, size = 0x2000, scoped, tag = 'output window, operand 0, single buffered']
    #allocation3 [shape = 's32[1]{0}', space=sflag, size = 0x4, scoped, tag = 'scoped memory for _train_call.1']
    %10 = vsyncpa [#allocation3], 0
    // Predicated region
    $region2: #{_train_call.1} parent=1 // pred_check
      _
    $region3: #{_train_call.1} parent=1 // pred_check_branch
      %12 = sbr.rel (0) target = $region5
    $region4: #{_train_call.1} parent=1 // pred_region
      _
    $region5: #{_train_call.1} parent=1 // pred_fallthru
      _
    // Predicated region
    $region6: #{_train_call.1} parent=1 // pred_check
      _
    $region7: #{_train_call.1} parent=1 // pred_check_branch
      %14 = sbr.rel (0) target = $region9
    $region8: #{_train_call.1} parent=1 // pred_region
      _
    $region9: #{_train_call.1} parent=1 // pred_fallthru
      _
    // Predicated region
    $region10: #{_train_call.1} parent=1 // pred_check
      _
    $region11: #{_train_call.1} parent=1 // pred_check_branch
      %16 = sbr.rel (0) target = $region13
    $region12: #{_train_call.1} parent=1 // pred_region
      _
    $region13: #{_train_call.1} parent=1 // pred_fallthru
      _
    %v17 = vld [vmem:[%s0] sm:$0xff]
    %v18 = vld [vmem:[%s0 + $0x8] sm:$0xff]
    %v19 = vlaneseq
    %v20 = vand.u32 %v19, 127
    %21 = vset.pattern.permute.xlu0 0
    %22 = vperm.xlu0 %21, %v17
    %v23 = vpop.permute.xlu0 %22
    %24 = vset.pattern.permute.xlu0 0
    %25 = vperm.xlu0 %24, %v18
    %v26 = vpop.permute.xlu0 %25
    %vm27 = vcmp.eq.s32.totalorder %v20, %v23
    %vm28 = vcmp.eq.s32.totalorder %v20, %v26
    %v29 = vsel %vm27, 1, 0
    %v30 = vsel %vm28, 1, 0
    %v31 = vcvt.s32.f32 %v29
    %v32 = vcvt.s32.f32 %v30
    %v33 = vld [vmem:[%s2] sm:$0xff]
    %v34 = vld [vmem:[%s2 + $0x8] sm:$0xff]
    %v35 = vld [vmem:[%s2 + $0x10] sm:$0xff]
    %v36 = vld [vmem:[%s2 + $0x18] sm:$0xff]
    %v37 = vld [vmem:[%s2 + $0x20] sm:$0xff]
    %v38 = vld [vmem:[%s2 + $0x28] sm:$0xff]
    %v39 = vld [vmem:[%s2 + $0x30] sm:$0xff]
    %v40 = vld [vmem:[%s2 + $0x38] sm:$0xff]
    %v41 = vld [vmem:[%s2 + $0x40] sm:$0xff]
    %vm42 = vcmask 588800
    %v44 = vsel %vm42, %v31, 0
    %v47 = vsel %vm42, %v32, 0
    %49 = vmatprep.subr.mxu0 0.0
    %v50 = vand.u32 %v33, 4294901760
    %51 = vmatpush1.msra.mxu0 %v50
    %52 = vmatprep.subr.mxu0 0.0
    %v53 = vand.u32 %v34, 4294901760
    %54 = vmatpush1.msra.mxu0 %v53
    %55 = vmatprep.subr.mxu0 0.0
    %v56 = vand.u32 %v35, 4294901760
    %57 = vmatpush1.msra.mxu0 %v56
    %58 = vmatprep.subr.mxu0 0.0
    %v59 = vand.u32 %v36, 4294901760
    %60 = vmatpush1.msra.mxu0 %v59
    %61 = vmatprep.subr.mxu0 0.0
    %v62 = vand.u32 %v37, 4294901760
    %63 = vmatpush1.msra.mxu0 %v62
    %64 = vmatprep.subr.mxu0 0.0
    %v65 = vand.u32 %v38, 4294901760
    %66 = vmatpush1.msra.mxu0 %v65
    %67 = vmatprep.subr.mxu0 0.0
    %v68 = vand.u32 %v39, 4294901760
    %69 = vmatpush1.msra.mxu0 %v68
    %70 = vmatprep.subr.mxu0 0.0
    %v71 = vand.u32 %v40, 4294901760
    %72 = vmatpush1.msra.mxu0 %v71
    %73 = vmatprep.subr.mxu0 0.0
    %v74 = vand.u32 %v41, 4294901760
    %75 = vmatpush1.msra.mxu0 %v74
    %76 = vmatprep.subr.mxu0 0.0
    %77 = vmatpush1.msra.mxu0 0.0
    %78 = vmatprep.subr.mxu0 0.0
    %79 = vmatpush1.msra.mxu0 0.0
    %80 = vmatprep.subr.mxu0 0.0
    %81 = vmatpush1.msra.mxu0 0.0
    %82 = vmatprep.subr.mxu0 0.0
    %83 = vmatpush1.msra.mxu0 0.0
    %84 = vmatprep.subr.mxu0 0.0
    %85 = vmatpush1.msra.mxu0 0.0
    %86 = vmatprep.subr.mxu0 0.0
    %87 = vmatpush1.msra.mxu0 0.0
    %88 = vmatprep.subr.mxu0 0.0
    %89 = vmatpush1.msra.mxu0 0.0
    %90 = vmatprep.subr.mxu0 0.0
    %91 = vmatpush1.msra.mxu0 0.0
    %92 = vmatprep.subr.mxu0 0.0
    %93 = vmatpush1.msra.mxu0 0.0
    %94 = vmatprep.subr.mxu0 0.0
    %95 = vmatpush1.msra.mxu0 0.0
    %96 = vmatprep.subr.mxu0 0.0
    %97 = vmatpush1.msra.mxu0 0.0
    %98 = vmatprep.subr.mxu0 0.0
    %99 = vmatpush1.msra.mxu0 0.0
    %100 = vmatprep.subr.mxu0 0.0
    %101 = vmatpush1.msra.mxu0 0.0
    %102 = vmatprep.subr.mxu0 0.0
    %103 = vmatpush1.msra.mxu0 0.0
    %104 = vmatprep.subr.mxu0 0.0
    %105 = vmatpush1.msra.mxu0 0.0
    %106 = vmatprep.subr.mxu0 0.0
    %107 = vmatpush1.msra.mxu0 0.0
    %108 = vmatprep.subr.mxu0 0.0
    %109 = vmatpush1.msra.mxu0 0.0
    %110 = vmatprep.subr.mxu0 0.0
    %111 = vmatpush1.msra.mxu0 0.0
    %112 = vmatprep.subr.mxu0 0.0
    %113 = vmatpush1.msra.mxu0 0.0
    %114 = vmatprep.subr.mxu0 0.0
    %115 = vmatpush1.msra.mxu0 0.0
    %116 = vmatprep.subr.mxu0 0.0
    %117 = vmatpush1.msra.mxu0 0.0
    %118 = vmatprep.subr.mxu0 0.0
    %119 = vmatpush1.msra.mxu0 0.0
    %120 = vmatprep.subr.mxu0 0.0
    %121 = vmatpush1.msra.mxu0 0.0
    %122 = vmatprep.mubr.f32.mxu0 0.0
    %v123 = vand.u32 %v44, 4294901760
    %v124 = vsub.f32 %v44, %v123
    %v125 = vand.u32 %v124, 4294901760
    %v126 = vsub.f32 %v124, %v125
    %v127 = vand.u32 %v126, 4294901760
    %128 = vmatmul.mubr.f32.gmra.mrb[0].mxu0 %v127
    %v129 = vpop.f32.mrb[0].mxu0
    %v130 = vadd.f32 0.0, %v129
    %v131 = vpop.f32.mrb[0].mxu0
    %132 = vmatprep.mubr.f32.mxu0 0.0
    %v133 = vand.u32 %v47, 4294901760
    %v134 = vsub.f32 %v47, %v133
    %v135 = vand.u32 %v134, 4294901760
    %v136 = vsub.f32 %v134, %v135
    %v137 = vand.u32 %v136, 4294901760
    %138 = vmatmul.mubr.f32.gmra.mrb[0].mxu0 %v137
    %v139 = vpop.f32.mrb[0].mxu0
    %v140 = vadd.f32 0.0, %v139
    %v141 = vpop.f32.mrb[0].mxu0
    %142 = vdwg.mxu0
    %143 = vmatprep.subr.mxu0 0.0
    %v144 = vand.u32 %v33, 4294901760
    %v145 = vsub.f32 %v33, %v144
    %v146 = vand.u32 %v145, 4294901760
    %v147 = vsub.f32 %v145, %v146
    %v148 = vand.u32 %v147, 4294901760
    %149 = vmatpush1.msra.mxu0 %v148
    %150 = vmatprep.subr.mxu0 0.0
    %v151 = vand.u32 %v34, 4294901760
    %v152 = vsub.f32 %v34, %v151
    %v153 = vand.u32 %v152, 4294901760
    %v154 = vsub.f32 %v152, %v153
    %v155 = vand.u32 %v154, 4294901760
    %156 = vmatpush1.msra.mxu0 %v155
    %157 = vmatprep.subr.mxu0 0.0
    %v158 = vand.u32 %v35, 4294901760
    %v159 = vsub.f32 %v35, %v158
    %v160 = vand.u32 %v159, 4294901760
    %v161 = vsub.f32 %v159, %v160
    %v162 = vand.u32 %v161, 4294901760
    %163 = vmatpush1.msra.mxu0 %v162
    %164 = vmatprep.subr.mxu0 0.0
    %v165 = vand.u32 %v36, 4294901760
    %v166 = vsub.f32 %v36, %v165
    %v167 = vand.u32 %v166, 4294901760
    %v168 = vsub.f32 %v166, %v167
    %v169 = vand.u32 %v168, 4294901760
    %170 = vmatpush1.msra.mxu0 %v169
    %171 = vmatprep.subr.mxu0 0.0
    %v172 = vand.u32 %v37, 4294901760
    %v173 = vsub.f32 %v37, %v172
    %v174 = vand.u32 %v173, 4294901760
    %v175 = vsub.f32 %v173, %v174
    %v176 = vand.u32 %v175, 4294901760
    %177 = vmatpush1.msra.mxu0 %v176
    %178 = vmatprep.subr.mxu0 0.0
    %v179 = vand.u32 %v38, 4294901760
    %v180 = vsub.f32 %v38, %v179
    %v181 = vand.u32 %v180, 4294901760
    %v182 = vsub.f32 %v180, %v181
    %v183 = vand.u32 %v182, 4294901760
    %184 = vmatpush1.msra.mxu0 %v183
    %185 = vmatprep.subr.mxu0 0.0
    %v186 = vand.u32 %v39, 4294901760
    %v187 = vsub.f32 %v39, %v186
    %v188 = vand.u32 %v187, 4294901760
    %v189 = vsub.f32 %v187, %v188
    %v190 = vand.u32 %v189, 4294901760
    %191 = vmatpush1.msra.mxu0 %v190
    %192 = vmatprep.subr.mxu0 0.0
    %v193 = vand.u32 %v40, 4294901760
    %v194 = vsub.f32 %v40, %v193
    %v195 = vand.u32 %v194, 4294901760
    %v196 = vsub.f32 %v194, %v195
    %v197 = vand.u32 %v196, 4294901760
    %198 = vmatpush1.msra.mxu0 %v197
    %199 = vmatprep.subr.mxu0 0.0
    %v200 = vand.u32 %v41, 4294901760
    %v201 = vsub.f32 %v41, %v200
    %v202 = vand.u32 %v201, 4294901760
    %v203 = vsub.f32 %v201, %v202
    %v204 = vand.u32 %v203, 4294901760
    %205 = vmatpush1.msra.mxu0 %v204
    %206 = vmatprep.subr.mxu0 0.0
    %207 = vmatpush1.msra.mxu0 0.0
    %208 = vmatprep.subr.mxu0 0.0
    %209 = vmatpush1.msra.mxu0 0.0
    %210 = vmatprep.subr.mxu0 0.0
    %211 = vmatpush1.msra.mxu0 0.0
    %212 = vmatprep.subr.mxu0 0.0
    %213 = vmatpush1.msra.mxu0 0.0
    %214 = vmatprep.subr.mxu0 0.0
    %215 = vmatpush1.msra.mxu0 0.0
    %216 = vmatprep.subr.mxu0 0.0
    %217 = vmatpush1.msra.mxu0 0.0
    %218 = vmatprep.subr.mxu0 0.0
    %219 = vmatpush1.msra.mxu0 0.0
    %220 = vmatprep.subr.mxu0 0.0
    %221 = vmatpush1.msra.mxu0 0.0
    %222 = vmatprep.subr.mxu0 0.0
    %223 = vmatpush1.msra.mxu0 0.0
    %224 = vmatprep.subr.mxu0 0.0
    %225 = vmatpush1.msra.mxu0 0.0
    %226 = vmatprep.subr.mxu0 0.0
    %227 = vmatpush1.msra.mxu0 0.0
    %228 = vmatprep.subr.mxu0 0.0
    %229 = vmatpush1.msra.mxu0 0.0
    %230 = vmatprep.subr.mxu0 0.0
    %231 = vmatpush1.msra.mxu0 0.0
    %232 = vmatprep.subr.mxu0 0.0
    %233 = vmatpush1.msra.mxu0 0.0
    %234 = vmatprep.subr.mxu0 0.0
    %235 = vmatpush1.msra.mxu0 0.0
    %236 = vmatprep.subr.mxu0 0.0
    %237 = vmatpush1.msra.mxu0 0.0
    %238 = vmatprep.subr.mxu0 0.0
    %239 = vmatpush1.msra.mxu0 0.0
    %240 = vmatprep.subr.mxu0 0.0
    %241 = vmatpush1.msra.mxu0 0.0
    %242 = vmatprep.subr.mxu0 0.0
    %243 = vmatpush1.msra.mxu0 0.0
    %244 = vmatprep.subr.mxu0 0.0
    %245 = vmatpush1.msra.mxu0 0.0
    %246 = vmatprep.subr.mxu0 0.0
    %247 = vmatpush1.msra.mxu0 0.0
    %248 = vmatprep.subr.mxu0 0.0
    %249 = vmatpush1.msra.mxu0 0.0
    %250 = vmatprep.subr.mxu0 0.0
    %251 = vmatpush1.msra.mxu0 0.0
    %252 = vmatprep.mubr.f32.mxu0 0.0
    %v253 = vand.u32 %v44, 4294901760
    %254 = vmatmul.mubr.f32.gmra.mrb[0].mxu0 %v253
    %v255 = vpop.f32.mrb[0].mxu0
    %v256 = vadd.f32 %v130, %v255
    %v257 = vpop.f32.mrb[0].mxu0
    %258 = vmatprep.mubr.f32.mxu0 0.0
    %v259 = vand.u32 %v47, 4294901760
    %260 = vmatmul.mubr.f32.gmra.mrb[0].mxu0 %v259
    %v261 = vpop.f32.mrb[0].mxu0
    %v262 = vadd.f32 %v140, %v261
    %v263 = vpop.f32.mrb[0].mxu0
    %264 = vdwg.mxu0
    %265 = vmatprep.subr.mxu0 0.0
    %v266 = vand.u32 %v33, 4294901760
    %v267 = vsub.f32 %v33, %v266
    %268 = vmatpush1.msra.mxu0 %v267
    %269 = vmatprep.subr.mxu0 0.0
    %v270 = vand.u32 %v34, 4294901760
    %v271 = vsub.f32 %v34, %v270
    %272 = vmatpush1.msra.mxu0 %v271
    %273 = vmatprep.subr.mxu0 0.0
    %v274 = vand.u32 %v35, 4294901760
    %v275 = vsub.f32 %v35, %v274
    %276 = vmatpush1.msra.mxu0 %v275
    %277 = vmatprep.subr.mxu0 0.0
    %v278 = vand.u32 %v36, 4294901760
    %v279 = vsub.f32 %v36, %v278
    %280 = vmatpush1.msra.mxu0 %v279
    %281 = vmatprep.subr.mxu0 0.0
    %v282 = vand.u32 %v37, 4294901760
    %v283 = vsub.f32 %v37, %v282
    %284 = vmatpush1.msra.mxu0 %v283
    %285 = vmatprep.subr.mxu0 0.0
    %v286 = vand.u32 %v38, 4294901760
    %v287 = vsub.f32 %v38, %v286
    %288 = vmatpush1.msra.mxu0 %v287
    %289 = vmatprep.subr.mxu0 0.0
    %v290 = vand.u32 %v39, 4294901760
    %v291 = vsub.f32 %v39, %v290
    %292 = vmatpush1.msra.mxu0 %v291
    %293 = vmatprep.subr.mxu0 0.0
    %v294 = vand.u32 %v40, 4294901760
    %v295 = vsub.f32 %v40, %v294
    %296 = vmatpush1.msra.mxu0 %v295
    %297 = vmatprep.subr.mxu0 0.0
    %v298 = vand.u32 %v41, 4294901760
    %v299 = vsub.f32 %v41, %v298
    %300 = vmatpush1.msra.mxu0 %v299
    %301 = vmatprep.subr.mxu0 0.0
    %302 = vmatpush1.msra.mxu0 0.0
    %303 = vmatprep.subr.mxu0 0.0
    %304 = vmatpush1.msra.mxu0 0.0
    %305 = vmatprep.subr.mxu0 0.0
    %306 = vmatpush1.msra.mxu0 0.0
    %307 = vmatprep.subr.mxu0 0.0
    %308 = vmatpush1.msra.mxu0 0.0
    %309 = vmatprep.subr.mxu0 0.0
    %310 = vmatpush1.msra.mxu0 0.0
    %311 = vmatprep.subr.mxu0 0.0
    %312 = vmatpush1.msra.mxu0 0.0
    %313 = vmatprep.subr.mxu0 0.0
    %314 = vmatpush1.msra.mxu0 0.0
    %315 = vmatprep.subr.mxu0 0.0
    %316 = vmatpush1.msra.mxu0 0.0
    %317 = vmatprep.subr.mxu0 0.0
    %318 = vmatpush1.msra.mxu0 0.0
    %319 = vmatprep.subr.mxu0 0.0
    %320 = vmatpush1.msra.mxu0 0.0
    %321 = vmatprep.subr.mxu0 0.0
    %322 = vmatpush1.msra.mxu0 0.0
    %323 = vmatprep.subr.mxu0 0.0
    %324 = vmatpush1.msra.mxu0 0.0
    %325 = vmatprep.subr.mxu0 0.0
    %326 = vmatpush1.msra.mxu0 0.0
    %327 = vmatprep.subr.mxu0 0.0
    %328 = vmatpush1.msra.mxu0 0.0
    %329 = vmatprep.subr.mxu0 0.0
    %330 = vmatpush1.msra.mxu0 0.0
    %331 = vmatprep.subr.mxu0 0.0
    %332 = vmatpush1.msra.mxu0 0.0
    %333 = vmatprep.subr.mxu0 0.0
    %334 = vmatpush1.msra.mxu0 0.0
    %335 = vmatprep.subr.mxu0 0.0
    %336 = vmatpush1.msra.mxu0 0.0
    %337 = vmatprep.subr.mxu0 0.0
    %338 = vmatpush1.msra.mxu0 0.0
    %339 = vmatprep.subr.mxu0 0.0
    %340 = vmatpush1.msra.mxu0 0.0
    %341 = vmatprep.subr.mxu0 0.0
    %342 = vmatpush1.msra.mxu0 0.0
    %343 = vmatprep.subr.mxu0 0.0
    %344 = vmatpush1.msra.mxu0 0.0
    %345 = vmatprep.subr.mxu0 0.0
    %346 = vmatpush1.msra.mxu0 0.0
    %347 = vmatprep.mubr.f32.mxu0 0.0
    %v348 = vand.u32 %v44, 4294901760
    %v349 = vsub.f32 %v44, %v348
    %350 = vmatmul.mubr.f32.gmra.mrb[0].mxu0 %v349
    %v351 = vpop.f32.mrb[0].mxu0
    %v352 = vadd.f32 %v256, %v351
    %v353 = vpop.f32.mrb[0].mxu0
    %354 = vmatprep.mubr.f32.mxu0 0.0
    %v355 = vand.u32 %v47, 4294901760
    %v356 = vsub.f32 %v47, %v355
    %357 = vmatmul.mubr.f32.gmra.mrb[0].mxu0 %v356
    %v358 = vpop.f32.mrb[0].mxu0
    %v359 = vadd.f32 %v262, %v358
    %v360 = vpop.f32.mrb[0].mxu0
    %361 = vdwg.mxu0
    %362 = vmatprep.subr.mxu0 0.0
    %v363 = vand.u32 %v33, 4294901760
    %364 = vmatpush1.msra.mxu0 %v363
    %365 = vmatprep.subr.mxu0 0.0
    %v366 = vand.u32 %v34, 4294901760
    %367 = vmatpush1.msra.mxu0 %v366
    %368 = vmatprep.subr.mxu0 0.0
    %v369 = vand.u32 %v35, 4294901760
    %370 = vmatpush1.msra.mxu0 %v369
    %371 = vmatprep.subr.mxu0 0.0
    %v372 = vand.u32 %v36, 4294901760
    %373 = vmatpush1.msra.mxu0 %v372
    %374 = vmatprep.subr.mxu0 0.0
    %v375 = vand.u32 %v37, 4294901760
    %376 = vmatpush1.msra.mxu0 %v375
    %377 = vmatprep.subr.mxu0 0.0
    %v378 = vand.u32 %v38, 4294901760
    %379 = vmatpush1.msra.mxu0 %v378
    %380 = vmatprep.subr.mxu0 0.0
    %v381 = vand.u32 %v39, 4294901760
    %382 = vmatpush1.msra.mxu0 %v381
    %383 = vmatprep.subr.mxu0 0.0
    %v384 = vand.u32 %v40, 4294901760
    %385 = vmatpush1.msra.mxu0 %v384
    %386 = vmatprep.subr.mxu0 0.0
    %v387 = vand.u32 %v41, 4294901760
    %388 = vmatpush1.msra.mxu0 %v387
    %389 = vmatprep.subr.mxu0 0.0
    %390 = vmatpush1.msra.mxu0 0.0
    %391 = vmatprep.subr.mxu0 0.0
    %392 = vmatpush1.msra.mxu0 0.0
    %393 = vmatprep.subr.mxu0 0.0
    %394 = vmatpush1.msra.mxu0 0.0
    %395 = vmatprep.subr.mxu0 0.0
    %396 = vmatpush1.msra.mxu0 0.0
    %397 = vmatprep.subr.mxu0 0.0
    %398 = vmatpush1.msra.mxu0 0.0
    %399 = vmatprep.subr.mxu0 0.0
    %400 = vmatpush1.msra.mxu0 0.0
    %401 = vmatprep.subr.mxu0 0.0
    %402 = vmatpush1.msra.mxu0 0.0
    %403 = vmatprep.subr.mxu0 0.0
    %404 = vmatpush1.msra.mxu0 0.0
    %405 = vmatprep.subr.mxu0 0.0
    %406 = vmatpush1.msra.mxu0 0.0
    %407 = vmatprep.subr.mxu0 0.0
    %408 = vmatpush1.msra.mxu0 0.0
    %409 = vmatprep.subr.mxu0 0.0
    %410 = vmatpush1.msra.mxu0 0.0
    %411 = vmatprep.subr.mxu0 0.0
    %412 = vmatpush1.msra.mxu0 0.0
    %413 = vmatprep.subr.mxu0 0.0
    %414 = vmatpush1.msra.mxu0 0.0
    %415 = vmatprep.subr.mxu0 0.0
    %416 = vmatpush1.msra.mxu0 0.0
    %417 = vmatprep.subr.mxu0 0.0
    %418 = vmatpush1.msra.mxu0 0.0
    %419 = vmatprep.subr.mxu0 0.0
    %420 = vmatpush1.msra.mxu0 0.0
    %421 = vmatprep.subr.mxu0 0.0
    %422 = vmatpush1.msra.mxu0 0.0
    %423 = vmatprep.subr.mxu0 0.0
    %424 = vmatpush1.msra.mxu0 0.0
    %425 = vmatprep.subr.mxu0 0.0
    %426 = vmatpush1.msra.mxu0 0.0
    %427 = vmatprep.subr.mxu0 0.0
    %428 = vmatpush1.msra.mxu0 0.0
    %429 = vmatprep.subr.mxu0 0.0
    %430 = vmatpush1.msra.mxu0 0.0
    %431 = vmatprep.subr.mxu0 0.0
    %432 = vmatpush1.msra.mxu0 0.0
    %433 = vmatprep.subr.mxu0 0.0
    %434 = vmatpush1.msra.mxu0 0.0
    %435 = vmatprep.mubr.f32.mxu0 0.0
    %v436 = vand.u32 %v44, 4294901760
    %v437 = vsub.f32 %v44, %v436
    %v438 = vand.u32 %v437, 4294901760
    %439 = vmatmul.mubr.f32.gmra.mrb[0].mxu0 %v438
    %v440 = vpop.f32.mrb[0].mxu0
    %v441 = vadd.f32 %v352, %v440
    %v442 = vpop.f32.mrb[0].mxu0
    %443 = vmatprep.mubr.f32.mxu0 0.0
    %v444 = vand.u32 %v47, 4294901760
    %v445 = vsub.f32 %v47, %v444
    %v446 = vand.u32 %v445, 4294901760
    %447 = vmatmul.mubr.f32.gmra.mrb[0].mxu0 %v446
    %v448 = vpop.f32.mrb[0].mxu0
    %v449 = vadd.f32 %v359, %v448
    %v450 = vpop.f32.mrb[0].mxu0
    %451 = vdwg.mxu0
    %452 = vmatprep.subr.mxu0 0.0
    %v453 = vand.u32 %v33, 4294901760
    %v454 = vsub.f32 %v33, %v453
    %v455 = vand.u32 %v454, 4294901760
    %456 = vmatpush1.msra.mxu0 %v455
    %457 = vmatprep.subr.mxu0 0.0
    %v458 = vand.u32 %v34, 4294901760
    %v459 = vsub.f32 %v34, %v458
    %v460 = vand.u32 %v459, 4294901760
    %461 = vmatpush1.msra.mxu0 %v460
    %462 = vmatprep.subr.mxu0 0.0
    %v463 = vand.u32 %v35, 4294901760
    %v464 = vsub.f32 %v35, %v463
    %v465 = vand.u32 %v464, 4294901760
    %466 = vmatpush1.msra.mxu0 %v465
    %467 = vmatprep.subr.mxu0 0.0
    %v468 = vand.u32 %v36, 4294901760
    %v469 = vsub.f32 %v36, %v468
    %v470 = vand.u32 %v469, 4294901760
    %471 = vmatpush1.msra.mxu0 %v470
    %472 = vmatprep.subr.mxu0 0.0
    %v473 = vand.u32 %v37, 4294901760
    %v474 = vsub.f32 %v37, %v473
    %v475 = vand.u32 %v474, 4294901760
    %476 = vmatpush1.msra.mxu0 %v475
    %477 = vmatprep.subr.mxu0 0.0
    %v478 = vand.u32 %v38, 4294901760
    %v479 = vsub.f32 %v38, %v478
    %v480 = vand.u32 %v479, 4294901760
    %481 = vmatpush1.msra.mxu0 %v480
    %482 = vmatprep.subr.mxu0 0.0
    %v483 = vand.u32 %v39, 4294901760
    %v484 = vsub.f32 %v39, %v483
    %v485 = vand.u32 %v484, 4294901760
    %486 = vmatpush1.msra.mxu0 %v485
    %487 = vmatprep.subr.mxu0 0.0
    %v488 = vand.u32 %v40, 4294901760
    %v489 = vsub.f32 %v40, %v488
    %v490 = vand.u32 %v489, 4294901760
    %491 = vmatpush1.msra.mxu0 %v490
    %492 = vmatprep.subr.mxu0 0.0
    %v493 = vand.u32 %v41, 4294901760
    %v494 = vsub.f32 %v41, %v493
    %v495 = vand.u32 %v494, 4294901760
    %496 = vmatpush1.msra.mxu0 %v495
    %497 = vmatprep.subr.mxu0 0.0
    %498 = vmatpush1.msra.mxu0 0.0
    %499 = vmatprep.subr.mxu0 0.0
    %500 = vmatpush1.msra.mxu0 0.0
    %501 = vmatprep.subr.mxu0 0.0
    %502 = vmatpush1.msra.mxu0 0.0
    %503 = vmatprep.subr.mxu0 0.0
    %504 = vmatpush1.msra.mxu0 0.0
    %505 = vmatprep.subr.mxu0 0.0
    %506 = vmatpush1.msra.mxu0 0.0
    %507 = vmatprep.subr.mxu0 0.0
    %508 = vmatpush1.msra.mxu0 0.0
    %509 = vmatprep.subr.mxu0 0.0
    %510 = vmatpush1.msra.mxu0 0.0
    %511 = vmatprep.subr.mxu0 0.0
    %512 = vmatpush1.msra.mxu0 0.0
    %513 = vmatprep.subr.mxu0 0.0
    %514 = vmatpush1.msra.mxu0 0.0
    %515 = vmatprep.subr.mxu0 0.0
    %516 = vmatpush1.msra.mxu0 0.0
    %517 = vmatprep.subr.mxu0 0.0
    %518 = vmatpush1.msra.mxu0 0.0
    %519 = vmatprep.subr.mxu0 0.0
    %520 = vmatpush1.msra.mxu0 0.0
    %521 = vmatprep.subr.mxu0 0.0
    %522 = vmatpush1.msra.mxu0 0.0
    %523 = vmatprep.subr.mxu0 0.0
    %524 = vmatpush1.msra.mxu0 0.0
    %525 = vmatprep.subr.mxu0 0.0
    %526 = vmatpush1.msra.mxu0 0.0
    %527 = vmatprep.subr.mxu0 0.0
    %528 = vmatpush1.msra.mxu0 0.0
    %529 = vmatprep.subr.mxu0 0.0
    %530 = vmatpush1.msra.mxu0 0.0
    %531 = vmatprep.subr.mxu0 0.0
    %532 = vmatpush1.msra.mxu0 0.0
    %533 = vmatprep.subr.mxu0 0.0
    %534 = vmatpush1.msra.mxu0 0.0
    %535 = vmatprep.subr.mxu0 0.0
    %536 = vmatpush1.msra.mxu0 0.0
    %537 = vmatprep.subr.mxu0 0.0
    %538 = vmatpush1.msra.mxu0 0.0
    %539 = vmatprep.subr.mxu0 0.0
    %540 = vmatpush1.msra.mxu0 0.0
    %541 = vmatprep.subr.mxu0 0.0
    %542 = vmatpush1.msra.mxu0 0.0
    %543 = vmatprep.mubr.f32.mxu0 0.0
    %v544 = vand.u32 %v44, 4294901760
    %545 = vmatmul.mubr.f32.gmra.mrb[0].mxu0 %v544
    %v546 = vpop.f32.mrb[0].mxu0
    %v547 = vadd.f32 %v441, %v546
    %v548 = vpop.f32.mrb[0].mxu0
    %549 = vmatprep.mubr.f32.mxu0 0.0
    %v550 = vand.u32 %v47, 4294901760
    %551 = vmatmul.mubr.f32.gmra.mrb[0].mxu0 %v550
    %v552 = vpop.f32.mrb[0].mxu0
    %v553 = vadd.f32 %v449, %v552
    %v554 = vpop.f32.mrb[0].mxu0
    %555 = vdwg.mxu0
    %556 = vmatprep.subr.mxu0 0.0
    %v557 = vand.u32 %v33, 4294901760
    %558 = vmatpush1.msra.mxu0 %v557
    %559 = vmatprep.subr.mxu0 0.0
    %v560 = vand.u32 %v34, 4294901760
    %561 = vmatpush1.msra.mxu0 %v560
    %562 = vmatprep.subr.mxu0 0.0
    %v563 = vand.u32 %v35, 4294901760
    %564 = vmatpush1.msra.mxu0 %v563
    %565 = vmatprep.subr.mxu0 0.0
    %v566 = vand.u32 %v36, 4294901760
    %567 = vmatpush1.msra.mxu0 %v566
    %568 = vmatprep.subr.mxu0 0.0
    %v569 = vand.u32 %v37, 4294901760
    %570 = vmatpush1.msra.mxu0 %v569
    %571 = vmatprep.subr.mxu0 0.0
    %v572 = vand.u32 %v38, 4294901760
    %573 = vmatpush1.msra.mxu0 %v572
    %574 = vmatprep.subr.mxu0 0.0
    %v575 = vand.u32 %v39, 4294901760
    %576 = vmatpush1.msra.mxu0 %v575
    %577 = vmatprep.subr.mxu0 0.0
    %v578 = vand.u32 %v40, 4294901760
    %579 = vmatpush1.msra.mxu0 %v578
    %580 = vmatprep.subr.mxu0 0.0
    %v581 = vand.u32 %v41, 4294901760
    %582 = vmatpush1.msra.mxu0 %v581
    %583 = vmatprep.subr.mxu0 0.0
    %584 = vmatpush1.msra.mxu0 0.0
    %585 = vmatprep.subr.mxu0 0.0
    %586 = vmatpush1.msra.mxu0 0.0
    %587 = vmatprep.subr.mxu0 0.0
    %588 = vmatpush1.msra.mxu0 0.0
    %589 = vmatprep.subr.mxu0 0.0
    %590 = vmatpush1.msra.mxu0 0.0
    %591 = vmatprep.subr.mxu0 0.0
    %592 = vmatpush1.msra.mxu0 0.0
    %593 = vmatprep.subr.mxu0 0.0
    %594 = vmatpush1.msra.mxu0 0.0
    %595 = vmatprep.subr.mxu0 0.0
    %596 = vmatpush1.msra.mxu0 0.0
    %597 = vmatprep.subr.mxu0 0.0
    %598 = vmatpush1.msra.mxu0 0.0
    %599 = vmatprep.subr.mxu0 0.0
    %600 = vmatpush1.msra.mxu0 0.0
    %601 = vmatprep.subr.mxu0 0.0
    %602 = vmatpush1.msra.mxu0 0.0
    %603 = vmatprep.subr.mxu0 0.0
    %604 = vmatpush1.msra.mxu0 0.0
    %605 = vmatprep.subr.mxu0 0.0
    %606 = vmatpush1.msra.mxu0 0.0
    %607 = vmatprep.subr.mxu0 0.0
    %608 = vmatpush1.msra.mxu0 0.0
    %609 = vmatprep.subr.mxu0 0.0
    %610 = vmatpush1.msra.mxu0 0.0
    %611 = vmatprep.subr.mxu0 0.0
    %612 = vmatpush1.msra.mxu0 0.0
    %613 = vmatprep.subr.mxu0 0.0
    %614 = vmatpush1.msra.mxu0 0.0
    %615 = vmatprep.subr.mxu0 0.0
    %616 = vmatpush1.msra.mxu0 0.0
    %617 = vmatprep.subr.mxu0 0.0
    %618 = vmatpush1.msra.mxu0 0.0
    %619 = vmatprep.subr.mxu0 0.0
    %620 = vmatpush1.msra.mxu0 0.0
    %621 = vmatprep.subr.mxu0 0.0
    %622 = vmatpush1.msra.mxu0 0.0
    %623 = vmatprep.subr.mxu0 0.0
    %624 = vmatpush1.msra.mxu0 0.0
    %625 = vmatprep.subr.mxu0 0.0
    %626 = vmatpush1.msra.mxu0 0.0
    %627 = vmatprep.subr.mxu0 0.0
    %628 = vmatpush1.msra.mxu0 0.0
    %629 = vmatprep.mubr.f32.mxu0 0.0
    %v630 = vand.u32 %v44, 4294901760
    %631 = vmatmul.mubr.f32.gmra.mrb[0].mxu0 %v630
    %v632 = vpop.f32.mrb[0].mxu0
    %v633 = vadd.f32 %v547, %v632
    %v634 = vpop.f32.mrb[0].mxu0
    %635 = vmatprep.mubr.f32.mxu0 0.0
    %v636 = vand.u32 %v47, 4294901760
    %637 = vmatmul.mubr.f32.gmra.mrb[0].mxu0 %v636
    %v638 = vpop.f32.mrb[0].mxu0
    %v639 = vadd.f32 %v553, %v638
    %v640 = vpop.f32.mrb[0].mxu0
    %641 = vdwg.mxu0
    %vm642 = vcmask 531456
    %643 = vst.msk [vmem:[#allocation2] sm:$0xff] %vm642, %v633
    %644 = vst.msk [vmem:[#allocation2 + $0x8] sm:$0xff] %vm642, %v639
    %v645 = vld [vmem:[%s1] sm:$0xff]
    %v646 = vld [vmem:[%s1 + $0x8] sm:$0xff]
    %vm647 = vcmp.eq.s32.totalorder %v20, 65
    %v648 = vsel %vm647, %v633, 0.0
    %v649 = vsel %vm647, %v639, 0.0
    %650 = vset.pattern.permute.xlu0 0
    %651 = vperm.xlu0 %650, %v645
    %v652 = vpop.permute.xlu0 %651
    %653 = vset.pattern.permute.xlu0 0
    %654 = vperm.xlu0 %653, %v646
    %v655 = vpop.permute.xlu0 %654
    %vm656 = vcmp.eq.s32.totalorder %v20, %v652
    %vm657 = vcmp.eq.s32.totalorder %v20, %v655
    %v658 = vsel %vm656, %v633, 0.0
    %v659 = vsel %vm657, %v639, 0.0
    %v660 = vsub.f32 %v648, %v658
    %v661 = vsub.f32 %v649, %v659
    %662 = vadd.xlane.f32.xlu0 %v660
    %v663 = vpop.xlane.xlu0 %662
    %664 = vadd.xlane.f32.xlu0 %v661
    %v665 = vpop.xlane.xlu0 %664
    %vm666 = vcmask 7168
    %667 = vst.msk [vmem:[%s4] sm:$0xff] %vm666, %v663
    %668 = vst.msk [vmem:[%s4 + $0x8] sm:$0xff] %vm666, %v665
    // Predicated region
    $region14: #{_train_call.1} parent=1 // pred_check
      _
    $region15: #{_train_call.1} parent=1 // pred_check_branch
      %670 = sbr.rel (0) target = $region17
    $region16: #{_train_call.1} parent=1 // pred_region
      %s672 = ssub.s32 256, 256
      %673 = vsyncadd [#allocation3], %s672
      %s674 = sshll.u32 [#allocation2], 4
      %s675 = int_to_ptr.vmem [resolvable:$true] %s674
      %680 = dma.vmem_to_hbm [thread:$0]  %s675, 256, %s3, [#allocation3], 128, 128, 8
    $region17: #{_train_call.1} parent=1 // pred_fallthru
      _
    // Predicated region
    $region18: #{_train_call.1} parent=1 // pred_check
      _
    $region19: #{_train_call.1} parent=1 // pred_check_branch
      %682 = sbr.rel (0) target = $region21
    $region20: #{_train_call.1} parent=1 // pred_region
      _
    $region21: #{_train_call.1} parent=1 // pred_fallthru
      _
    // Predicated region
    $region22: #{_train_call.1} parent=1 // pred_check
      _
    $region23: #{_train_call.1} parent=1 // pred_check_branch
      %684 = sbr.rel (0) target = $region25
    $region24: #{_train_call.1} parent=1 // pred_region
      %685 = dma.done [#allocation3], 256
    $region25: #{_train_call.1} parent=1 // pred_fallthru
      _
    // Predicated region
    $region26: #{_train_call.1} parent=1 // pred_check
      _
    $region27: #{_train_call.1} parent=1 // pred_check_branch
      %687 = sbr.rel (0) target = $region29
    $region28: #{_train_call.1} parent=1 // pred_region
      _
    $region29: #{_train_call.1} parent=1 // pred_fallthru
      _
    %688 = vsyncpa [#allocation3], 1

</llo_original>
